<compile_context>
chip_gen: v7x
topology: tpu7x:2x2x1
jax: 0.10.0
libtpu: 0.0.40
codegen_flags: <defaults>
</compile_context>

<pallas_src>
import functools

import jax
import jax.numpy as jnp
from jax.experimental import pallas as pl
from jax.experimental.pallas import tpu as pltpu


# ---------------------------------------------------------------------------
# Helpers
# ---------------------------------------------------------------------------
def _round_up(x, mult):
    return (x + mult - 1) // mult * mult


def _gram(a, b):
    # a @ b.T as an MXU "NT" matmul in the inputs' NATIVE dtype (bf16 stays bf16
    # on the MXU); accumulation is forced to f32 via preferred_element_type.
    return jax.lax.dot_general(
        a, b, (((1,), (1,)), ((), ())), preferred_element_type=jnp.float32
    )


# ---------------------------------------------------------------------------
# Linear MMD^2: per-tile column-sum partials.
#   * batch tiles sized from a VMEM budget (512-1024 rows typical),
#   * grid axis is "parallel" (independent partial outputs -> both v7x cores),
#   * NO row padding copies: src/tgt are tiled independently and the garbage
#     tail of the last partial block is masked in-kernel,
#   * tiny delta/dot epilogue on d-length vectors done in plain JAX.
# ---------------------------------------------------------------------------
def _colsum_kernel(x_ref, out_ref, *, n_rows, tile_b, mask_tail):
    i = pl.program_id(0)
    x = x_ref[...]
    if mask_tail:
        # last block extends past n_rows; its out-of-bounds rows are undefined.
        row = jax.lax.broadcasted_iota(jnp.int32, x.shape, 0) + i * tile_b
        x = jnp.where(row < n_rows, x, jnp.zeros_like(x))
    xf = x.astype(jnp.float32)
    out_ref[...] = jnp.sum(xf, axis=0, keepdims=True).reshape(1, 1, x.shape[1])


def _col_sum_partials(x, *, max_tile_rows=1024, row_budget_bytes=16 << 20):
    n, d = x.shape
    itemsize = jnp.dtype(x.dtype).itemsize
    # rows per tile from a double-buffered VMEM budget, capped at 1024.
    tile_b = row_budget_bytes // (2 * max(d, 1) * itemsize)
    tile_b = max(8, min(max_tile_rows, tile_b))
    tile_b = min(tile_b, _round_up(n, 8))
    tile_b = max(8, (tile_b // 8) * 8)
    num_tiles = (n + tile_b - 1) // tile_b
    mask_tail = (n % tile_b) != 0

    kernel = functools.partial(
        _colsum_kernel, n_rows=n, tile_b=tile_b, mask_tail=mask_tail
    )
    return pl.pallas_call(
        kernel,
        out_shape=jax.ShapeDtypeStruct((num_tiles, 1, d), jnp.float32),
        grid_spec=pltpu.PrefetchScalarGridSpec(
            num_scalar_prefetch=0,
            grid=(num_tiles,),
            in_specs=[pl.BlockSpec((tile_b, d), lambda i: (i, 0))],
            out_specs=pl.BlockSpec((1, 1, d), lambda i: (i, 0, 0)),
        ),
        compiler_params=pltpu.CompilerParams(
            dimension_semantics=("parallel",),  # independent partials -> megacore
            vmem_limit_bytes=48 * 1024 * 1024,
        ),
        cost_estimate=pl.CostEstimate(
            flops=2 * n * d,
            transcendentals=0,
            bytes_accessed=n * d * itemsize + num_tiles * d * 4,
        ),
    )(x)


def _linear_mmd2(source, target):
    n, d = source.shape
    m, d2 = target.shape
    assert d == d2, "source/target feature dims must match"
    s_part = _col_sum_partials(source)
    t_part = _col_sum_partials(target)
    # Tiny epilogue on d-length vectors (partial-sum combine + delta.dot(delta)).
    delta = s_part.sum(axis=(0, 1)) / n - t_part.sum(axis=(0, 1)) / m
    return jnp.dot(delta, delta)


# ---------------------------------------------------------------------------
# RBF MMD: Gram blocks (S.S^T, S.T^T, T.T^T) accumulated on the MXU over
# feature tiles; squared row norms accumulated incrementally in BOTH layouts
# ((k,1) via a lane reduce, (1,k) via a ones-vector matmul) so the finalize
# needs no diag extraction and no transpose; l2 computed IN PLACE over the Gram
# scratch; multi-Gaussian sum fused into a weighted scalar reduction.
# ---------------------------------------------------------------------------
def _rbf_mmd_kernel(src_ref, tgt_ref, out_ref,
                    gss_ref, gst_ref, gtt_ref,
                    rs_col_ref, rs_row_ref, rt_col_ref, rt_row_ref,
                    *, n, m, d_full, tile_d, kernel_mul, kernel_num, fix_sigma,
                    num_d_tiles, mask_tail):
    k = pl.program_id(0)

    s = src_ref[...]
    t = tgt_ref[...]
    if mask_tail:
        # last feature tile is partial; zero the undefined trailing columns.
        scol = jax.lax.broadcasted_iota(jnp.int32, s.shape, 1) + k * tile_d
        s = jnp.where(scol < d_full, s, jnp.zeros_like(s))
        tcol = jax.lax.broadcasted_iota(jnp.int32, t.shape, 1) + k * tile_d
        t = jnp.where(tcol < d_full, t, jnp.zeros_like(t))

    # MXU Gram partials, native input dtype, f32 accumulation.
    g_ss = _gram(s, s)          # (n, n)
    g_st = _gram(s, t)          # (n, m)
    g_tt = _gram(t, t)          # (m, m)

    # Squared-row-norm partials in both layouts (no diag trick, no transpose).
    sf = s.astype(jnp.float32)
    tf = t.astype(jnp.float32)
    ss2 = sf * sf
    tt2 = tf * tf
    ones_row = jnp.ones((1, sf.shape[1]), jnp.float32)
    r_s_col = jnp.sum(ss2, axis=1, keepdims=True)                       # (n, 1)
    r_t_col = jnp.sum(tt2, axis=1, keepdims=True)                       # (m, 1)
    r_s_row = jax.lax.dot_general(ones_row, ss2, (((1,), (1,)), ((), ())),
                                  preferred_element_type=jnp.float32)   # (1, n)
    r_t_row = jax.lax.dot_general(ones_row, tt2, (((1,), (1,)), ((), ())),
                                  preferred_element_type=jnp.float32)   # (1, m)

    if num_d_tiles == 1:
        # single feature tile: plain assignment, no zero-init + read-modify-write.
        gss_ref[...] = g_ss
        gst_ref[...] = g_st
        gtt_ref[...] = g_tt
        rs_col_ref[...] = r_s_col
        rs_row_ref[...] = r_s_row
        rt_col_ref[...] = r_t_col
        rt_row_ref[...] = r_t_row
    else:
        @pl.when(k == 0)
        def _assign_first():
            gss_ref[...] = g_ss
            gst_ref[...] = g_st
            gtt_ref[...] = g_tt
            rs_col_ref[...] = r_s_col
            rs_row_ref[...] = r_s_row
            rt_col_ref[...] = r_t_col
            rt_row_ref[...] = r_t_row

        @pl.when(k != 0)
        def _accumulate():
            gss_ref[...] += g_ss
            gst_ref[...] += g_st
            gtt_ref[...] += g_tt
            rs_col_ref[...] += r_s_col
            rs_row_ref[...] += r_s_row
            rt_col_ref[...] += r_t_col
            rt_row_ref[...] += r_t_row

    @pl.when(k == pl.num_programs(0) - 1)
    def _finalize():
        rs_c = rs_col_ref[...]
        rs_r = rs_row_ref[...]
        rt_c = rt_col_ref[...]
        rt_r = rt_row_ref[...]

        # ||x - y||^2 = ||x||^2 + ||y||^2 - 2 x.y ; clamp FP cancellation.
        # Overwrite the Gram scratch in place (halves the finalize VMEM peak).
        gss_ref[...] = jnp.maximum(rs_c + rs_r - 2.0 * gss_ref[...], 0.0)  # (n,n)
        gst_ref[...] = jnp.maximum(rs_c + rt_r - 2.0 * gst_ref[...], 0.0)  # (n,m)
        gtt_ref[...] = jnp.maximum(rt_c + rt_r - 2.0 * gtt_ref[...], 0.0)  # (m,m)

        n_samples = n + m
        if fix_sigma:
            bandwidth = jnp.float32(fix_sigma)
        else:
            # sum over the full (N, N) distance matrix (off-diag blocks symmetric).
            total_l2 = (jnp.sum(gss_ref[...]) + jnp.sum(gtt_ref[...])
                        + 2.0 * jnp.sum(gst_ref[...]))
            bandwidth = total_l2 / jnp.float32(n_samples * n_samples - n_samples)
        bandwidth = bandwidth / jnp.float32(kernel_mul ** (kernel_num // 2))

        inv_nn = jnp.float32(1.0 / (n * n))
        inv_mm = jnp.float32(1.0 / (m * m))
        inv_nm = jnp.float32(1.0 / (n * m))

        # loss = XX + YY - XY - YX; each Gaussian band is reduced immediately so
        # the (N, N) multi-kernel sum never materializes.
        # TODO(synk): on v6e/v7x the exp epilogue is EUP-bound; a bf16-argument
        # exp would ~2x it but perturbs accuracy, so it is not enabled here.
        acc = jnp.float32(0.0)
        for i in range(kernel_num):  # unrolled at trace time
            scale = jnp.float32(-1.0) / (bandwidth * jnp.float32(kernel_mul ** i))
            acc = acc + inv_nn * jnp.sum(jnp.exp(gss_ref[...] * scale))
            acc = acc + inv_mm * jnp.sum(jnp.exp(gtt_ref[...] * scale))
            acc = acc - 2.0 * inv_nm * jnp.sum(jnp.exp(gst_ref[...] * scale))
        out_ref[0, 0] = acc


def _rbf_mmd(source, target, *, kernel_mul, kernel_num, fix_sigma):
    n, d = source.shape
    m, d2 = target.shape
    assert d == d2, "source/target feature dims must match"
    itemsize = max(jnp.dtype(source.dtype).itemsize, jnp.dtype(target.dtype).itemsize)

    # Resident Gram scratch (f32) + double-buffered input blocks must fit VMEM;
    # budget sized for v7x's 64 MiB per TensorCore (v5e/v6e have more headroom).
    gram_bytes = 4 * (n * n + n * m + m * m)
    input_budget = max(2 * 1024 * 1024, 36 * 1024 * 1024 - gram_bytes)

    if d <= 512:
        tile_d = d                      # single tile covers the full feature dim
    else:
        per_col = 2 * (n + m) * itemsize            # 2 buffers x (src+tgt) per column
        max_cols = input_budget // max(per_col, 1)
        tile_d = int(max(128, min(512, (max_cols // 128) * 128)))
    num_d_tiles = (d + tile_d - 1) // tile_d
    mask_tail = (d % tile_d) != 0       # partial last feature tile -> mask in-kernel
                                        # (no jnp.pad copies, no padded HBM traffic)

    # TODO(synk): for very large n+m the resident (N,N) Gram blocks exceed VMEM
    # (~1.3-1.4k rows on v7x); that regime needs a two-pass (N,N)-tiled design
    # with a 'parallel' row-tile axis. Current design keeps them resident.
    need = (gram_bytes
            + 2 * 2 * (n + m) * tile_d * itemsize
            + 4 * 8 * _round_up(max(n, m), 128) * 4)
    vmem_limit = int(min(56 * 1024 * 1024, max(32 * 1024 * 1024, need + (8 << 20))))

    kernel = functools.partial(
        _rbf_mmd_kernel, n=n, m=m, d_full=d, tile_d=tile_d,
        kernel_mul=kernel_mul, kernel_num=kernel_num, fix_sigma=fix_sigma,
        num_d_tiles=num_d_tiles, mask_tail=mask_tail,
    )
    loss = pl.pallas_call(
        kernel,
        out_shape=jax.ShapeDtypeStruct((1, 1), jnp.float32),
        grid_spec=pltpu.PrefetchScalarGridSpec(
            num_scalar_prefetch=0,
            grid=(num_d_tiles,),
            in_specs=[
                pl.BlockSpec((n, tile_d), lambda k: (0, k)),
                pl.BlockSpec((m, tile_d), lambda k: (0, k)),
            ],
            out_specs=pl.BlockSpec(memory_space=pltpu.MemorySpace.SMEM),
            scratch_shapes=[
                pltpu.VMEM((n, n), jnp.float32),
                pltpu.VMEM((n, m), jnp.float32),
                pltpu.VMEM((m, m), jnp.float32),
                pltpu.VMEM((n, 1), jnp.float32),
                pltpu.VMEM((1, n), jnp.float32),
                pltpu.VMEM((m, 1), jnp.float32),
                pltpu.VMEM((1, m), jnp.float32),
            ],
        ),
        compiler_params=pltpu.CompilerParams(
            dimension_semantics=("arbitrary",),  # feature axis is a reduction
            vmem_limit_bytes=vmem_limit,
        ),
        cost_estimate=pl.CostEstimate(
            flops=2 * (n * n + n * m + m * m) * d
            + 4 * kernel_num * (n * n + n * m + m * m),
            transcendentals=kernel_num * (n * n + n * m + m * m),
            bytes_accessed=(n + m) * d * itemsize + 4,
        ),
    )(source, target)
    return loss[0, 0]


# ---------------------------------------------------------------------------
# Wrapper (mirrors MMDLoss forward)
# ---------------------------------------------------------------------------
class MMDLoss:
    def __init__(self, kernel_type="linear", kernel_mul=2.0, kernel_num=5,
                 fix_sigma=None, **kwargs):
        self.kernel_type = kernel_type
        self.kernel_mul = kernel_mul
        self.kernel_num = kernel_num
        # Mirrors the PyTorch module, which silently discards fix_sigma.
        self.fix_sigma = None

    def __call__(self, source, target):
        if self.kernel_type == "linear":
            return _linear_mmd2(source, target)
        elif self.kernel_type == "rbf":
            return _rbf_mmd(source, target, kernel_mul=self.kernel_mul,
                            kernel_num=self.kernel_num, fix_sigma=self.fix_sigma)
        raise ValueError(f"unknown kernel_type {self.kernel_type}")


# ---------------------------------------------------------------------------
# Pure-JAX references (naive formulas, identical to PyTorch semantics)
# ---------------------------------------------------------------------------
def _linear_ref(source, target):
    delta = (jnp.mean(source.astype(jnp.float32), 0)
             - jnp.mean(target.astype(jnp.float32), 0))
    return jnp.dot(delta, delta)


def _rbf_ref(source, target, kernel_mul=2.0, kernel_num=5):
    n = source.shape[0]
    total = jnp.concatenate([source, target], axis=0).astype(jnp.float32)
    N = total.shape[0]
    diff = total[None, :, :] - total[:, None, :]
    l2 = jnp.sum(diff * diff, axis=2)
    bandwidth = jnp.sum(l2) / (N ** 2 - N)
    bandwidth = bandwidth / (kernel_mul ** (kernel_num // 2))
    kernels = sum(jnp.exp(-l2 / (bandwidth * kernel_mul ** i)) for i in range(kernel_num))
    xx = jnp.mean(kernels[:n, :n])
    yy = jnp.mean(kernels[n:, n:])
    xy = jnp.mean(kernels[:n, n:])
    yx = jnp.mean(kernels[n:, :n])
    return xx + yy - xy - yx


if __name__ == "__main__":
    key = jax.random.PRNGKey(0)
    k1, k2, k3, k4 = jax.random.split(key, 4)

    # Small shapes matching the module's (n, features) / (m, features) convention.
    n, m, d = 8, 8, 32
    source = jax.random.normal(k1, (n, d), dtype=jnp.float32)
    target = jax.random.normal(k2, (m, d), dtype=jnp.float32) + 0.5

    # Default branch of the PyTorch module: kernel_type='linear'.
    linear_loss = MMDLoss(kernel_type="linear")(source, target)
    jax.block_until_ready(linear_loss)
    assert jnp.allclose(linear_loss, _linear_ref(source, target), rtol=1e-4, atol=1e-5)

    # 'rbf' branch.
    rbf_loss = MMDLoss(kernel_type="rbf")(source, target)
    jax.block_until_ready(rbf_loss)
    assert jnp.allclose(rbf_loss, _rbf_ref(source, target), rtol=1e-4, atol=1e-5)

    # Linear path: unequal n/m (independent tiling, in-kernel tail masking).
    src_big = jax.random.normal(k3, (300, 128), dtype=jnp.float32)
    tgt_big = jax.random.normal(k4, (200, 128), dtype=jnp.float32) + 0.25
    lin_big = MMDLoss(kernel_type="linear")(src_big, tgt_big)
    jax.block_until_ready(lin_big)
    assert jnp.allclose(lin_big, _linear_ref(src_big, tgt_big), rtol=1e-3, atol=1e-5)

    # Linear path: multi-tile parallel grid (n > tile_b) with a masked tail tile.
    src_tall = jax.random.normal(k3, (2500, 64), dtype=jnp.float32)
    tgt_tall = jax.random.normal(k4, (1300, 64), dtype=jnp.float32) + 0.25
    lin_tall = MMDLoss(kernel_type="linear")(src_tall, tgt_tall)
    jax.block_until_ready(lin_tall)
    assert jnp.allclose(lin_tall, _linear_ref(src_tall, tgt_tall), rtol=1e-3, atol=1e-5)

    # RBF path: feature-tiled reduction (d > 512) with a masked partial tile.
    src_wide = jax.random.normal(k3, (16, 700), dtype=jnp.float32)
    tgt_wide = jax.random.normal(k4, (24, 700), dtype=jnp.float32) + 0.25
    rbf_wide = MMDLoss(kernel_type="rbf")(src_wide, tgt_wide)
    jax.block_until_ready(rbf_wide)
    assert jnp.allclose(rbf_wide, _rbf_ref(src_wide, tgt_wide), rtol=1e-3, atol=1e-5)

    print("KERNEL_OK")
</pallas_src>

<mosaic_0001>
module attributes {stable_mosaic.version = 11 : i64} {
  func.func @_colsum_kernel(%arg0: i32, %arg1: memref<8x32xf32, #tpu.memory_space<vmem>>, %arg2: memref<1x1x32xf32, #tpu.memory_space<vmem>>) attributes {dimension_semantics = [#tpu.dimension_semantics<parallel>], iteration_bounds = array<i64: 1>, scalar_prefetch = 0 : i64, scratch_operands = 0 : i64, tpu.core_type = #tpu.core_type<tc>, window_params = [{transform_indices = @transform_0, window_bounds = array<i64: 8, 32>}, {transform_indices = @transform_1, window_bounds = array<i64: 1, 1, 32>}]} {
    %c0 = arith.constant 0 : index
    %c0_0 = arith.constant 0 : index
    %0 = vector.load %arg1[%c0, %c0_0] : memref<8x32xf32, #tpu.memory_space<vmem>>, vector<8x32xf32>
    %cst = arith.constant dense<0.000000e+00> : vector<32xf32>
    %1 = vector.multi_reduction <add>, %0, %cst [0] : vector<8x32xf32> to vector<32xf32>
    %2 = vector.shape_cast %1 : vector<32xf32> to vector<1x32xf32>
    %3 = vector.shape_cast %2 : vector<1x32xf32> to vector<1x1x32xf32>
    %c0_1 = arith.constant 0 : index
    %c0_2 = arith.constant 0 : index
    %c0_3 = arith.constant 0 : index
    %4 = vector.load %arg2[%c0_1, %c0_2, %c0_3] : memref<1x1x32xf32, #tpu.memory_space<vmem>>, vector<1x1x32xf32>
    tpu.vector_store %arg2[%c0_1, %c0_2, %c0_3], %3 {strides = array<i32>} : memref<1x1x32xf32, #tpu.memory_space<vmem>>, vector<1x1x32xf32>,
    return
  }
  func.func @transform_0(%arg0: i32) -> (i32, i32) {
    %c0_i32 = arith.constant 0 : i32
    %c0_i32_0 = arith.constant 0 : i32
    return %arg0, %c0_i32 : i32, i32
  }
  func.func @transform_1(%arg0: i32) -> (i32, i32, i32) {
    %c0_i32 = arith.constant 0 : i32
    %c0_i32_0 = arith.constant 0 : i32
    %c0_i32_1 = arith.constant 0 : i32
    return %arg0, %c0_i32, %c0_i32_0 : i32, i32, i32
  }
}

</mosaic_0001>

<llo_original>
// kernel: tpu_custom_call.1
$region0: #{tpu_custom_call.1}
  #allocation0 [shape = 'u32[]', space=smem, size = 0x4, offset = 0x4, fixed_abs, tag = 'smem constant byte address 0x4 - core index']
  #allocation1 [shape = 'u32[144,128]{1,0:T(1,128)}', space=vmem, size = 0x12000, scoped, tag = 'internal scratch']
  %s0 = inlined_call_operand.hbm [shape: f32[8,32], index: 0, kind: input, shape index: {}]
  %s1 = inlined_call_operand.hbm [shape: f32[1,1,32], index: 1, kind: output, shape index: {}]
  %s2 = sld [smem:[#allocation0]]
  $region18: #{tpu_custom_call.1} parent=0
    _
  %s4 = ssub.s32 1, %s2
  %s5 = scalar_select 0, %s4, %s2
  $region1: #{tpu_custom_call.1} parent=0
    #allocation2 [shape = 'u8[4096]{0}', space=vmem, size = 0x1000, scoped, tag = 'input window, operand 0, single buffered']
    #allocation3 [shape = 's32[1]{0}', space=sflag, size = 0x4, scoped, tag = 'scoped memory for tpu_custom_call.1']
    #allocation4 [shape = 's32[1]{0}', space=sflag, size = 0x4, scoped, tag = 'scoped memory for tpu_custom_call.1']
    #allocation5 [shape = 'u8[512]{0}', space=vmem, size = 0x400, scoped, tag = 'output window, operand 0, single buffered']
    %6 = vsyncpa [#allocation3], 0
    %7 = vsyncpa [#allocation4], 0
    // Predicated region
    $region2: #{tpu_custom_call.1} parent=1 // pred_check
      _
    $region3: #{tpu_custom_call.1} parent=1 // pred_check_branch
      %9 = sbr.rel (0) target = $region5
    $region4: #{tpu_custom_call.1} parent=1 // pred_region
      %s11 = ssub.s32 128, 128
      %12 = vsyncadd [#allocation3], %s11
      %s14 = sshll.u32 [#allocation2], 4
      %s15 = int_to_ptr.vmem [resolvable:$true] %s14
      %17 = dma.hbm_to_vmem [thread:$0]  %s0, 128, %s15, [#allocation3]
    $region5: #{tpu_custom_call.1} parent=1 // pred_fallthru
      _
    // Predicated region
    $region6: #{tpu_custom_call.1} parent=1 // pred_check
      _
    $region7: #{tpu_custom_call.1} parent=1 // pred_check_branch
      %19 = sbr.rel (0) target = $region9
    $region8: #{tpu_custom_call.1} parent=1 // pred_region
      %20 = dma.done [#allocation3], 128
    $region9: #{tpu_custom_call.1} parent=1 // pred_fallthru
      _
    %v21 = vld [vmem:[#allocation2] sm:$0xff]
    %vm22 = vcmask 261120
    %v23 = vsel %vm22, %v21, 0.0
    %v24 = vrot.slane %v23, 4
    %v25 = vadd.f32 %v23, %v24
    %v26 = vrot.slane %v25, 2
    %v27 = vadd.f32 %v25, %v26
    %v28 = vrot.slane %v27, 1
    %v29 = vadd.f32 %v27, %v28
    %vm30 = vcmask 253952
    %31 = vst.msk [vmem:[#allocation5] sm:$0x1] %vm30, %v29
    // Predicated region
    $region10: #{tpu_custom_call.1} parent=1 // pred_check
      _
    $region11: #{tpu_custom_call.1} parent=1 // pred_check_branch
      %33 = sbr.rel (0) target = $region13
    $region12: #{tpu_custom_call.1} parent=1 // pred_region
      %s35 = ssub.s32 16, 16
      %36 = vsyncadd [#allocation4], %s35
      %s38 = sshll.u32 [#allocation5], 4
      %s39 = int_to_ptr.vmem [resolvable:$true] %s38
      %41 = dma.vmem_to_hbm [thread:$0]  %s39, 16, %s1, [#allocation4]
    $region13: #{tpu_custom_call.1} parent=1 // pred_fallthru
      _
    // Predicated region
    $region14: #{tpu_custom_call.1} parent=1 // pred_check
      _
    $region15: #{tpu_custom_call.1} parent=1 // pred_check_branch
      %43 = sbr.rel (0) target = $region17
    $region16: #{tpu_custom_call.1} parent=1 // pred_region
      %44 = dma.done [#allocation4], 16
    $region17: #{tpu_custom_call.1} parent=1 // pred_fallthru
      _
    %45 = vsyncpa [#allocation3], 1
    %46 = vsyncpa [#allocation4], 1

</llo_original>
